<compile_context>
chip_gen: v7x
topology: tpu7x:2x2x1
jax: 0.10.0
libtpu: 0.0.40
codegen_flags: <defaults>
</compile_context>

<pallas_src>
import math
import functools

import jax
import jax.numpy as jnp
from jax import lax
from jax.experimental import pallas as pl
from jax.experimental.pallas import tpu as pltpu

# Leave headroom on v7x (64 MiB physical per TC); plenty for the few-MiB tiles used.
_VMEM_LIMIT = 48 * 1024 * 1024


def _pick_tile(dim, candidates):
    """Largest MXU-friendly tile that divides `dim`, else the full dim."""
    for t in candidates:
        if dim >= t and dim % t == 0:
            return t
    # TODO(synk): dims not divisible by 128 fall back to one full-dim tile; a
    # cdiv grid + masked tail would bound VMEM for very large ragged dims.
    return dim


# --------------------------------------------------------------------------
# Tiled linear (x @ W + b) with K-reduction grid axis and f32 accumulator.
# --------------------------------------------------------------------------
def _linear_bias_kernel(x_ref, w_ref, b_ref, o_ref, acc_ref):
    k = pl.program_id(2)

    @pl.when(k == 0)
    def _init():
        acc_ref[...] = jnp.zeros_like(acc_ref)

    acc_ref[...] += jnp.dot(x_ref[...], w_ref[...],
                            preferred_element_type=jnp.float32)

    @pl.when(k == pl.num_programs(2) - 1)
    def _finalize():
        o_ref[...] = (acc_ref[...]
                      + b_ref[...].astype(jnp.float32)).astype(o_ref.dtype)


def linear_pallas(x2d, w, b, out_dtype):
    """x2d: [M, K]; w: [K, N] (PyTorch weight.T); b: [N] -> [M, N]."""
    M, K = x2d.shape
    K2, N = w.shape
    assert K == K2
    # Bigger M/N tiles -> fewer weight re-reads from HBM; acc is only tm*tn*4 B.
    tm = _pick_tile(M, (512, 256, 128))
    tn = _pick_tile(N, (512, 256, 128))
    tk = _pick_tile(K, (512, 256, 128))
    b2 = b.reshape(1, N).astype(jnp.float32)

    return pl.pallas_call(
        _linear_bias_kernel,
        out_shape=jax.ShapeDtypeStruct((M, N), out_dtype),
        grid_spec=pltpu.PrefetchScalarGridSpec(
            num_scalar_prefetch=0,
            grid=(M // tm, N // tn, K // tk),
            in_specs=[
                pl.BlockSpec((tm, tk), lambda i, j, k: (i, k)),   # x
                pl.BlockSpec((tk, tn), lambda i, j, k: (k, j)),   # W
                pl.BlockSpec((1, tn), lambda i, j, k: (0, j)),    # bias
            ],
            out_specs=pl.BlockSpec((tm, tn), lambda i, j, k: (i, j)),
            scratch_shapes=[pltpu.VMEM((tm, tn), jnp.float32)],
        ),
        compiler_params=pltpu.CompilerParams(
            dimension_semantics=("parallel", "parallel", "arbitrary"),
            vmem_limit_bytes=_VMEM_LIMIT),
    )(x2d, w, b2)


# --------------------------------------------------------------------------
# Flash attention (causal, online softmax, lower-triangular block schedule).
# --------------------------------------------------------------------------
def _flash_kernel(qblk_ref, kblk_ref, q_ref, k_ref, v_ref, o_ref,
                  m_ref, l_ref, acc_ref, *, tq, tk, use_approx_recip):
    p = pl.program_id(2)
    qi = qblk_ref[p]                      # q block index of this pair
    ki = kblk_ref[p]                      # kv block index of this pair
    q_row0 = qi * tq
    k_col0 = ki * tk
    is_first = ki == 0                    # first kv block of this q row
    # diagonal (last relevant) kv block of this q row
    is_last = (k_col0 + tk) >= (q_row0 + tq)
    # block lies entirely below the diagonal -> no in-block mask needed
    full = q_row0 >= (k_col0 + tk - 1)

    @pl.when(is_first)
    def _init():
        m_ref[...] = jnp.full_like(m_ref, -jnp.inf)
        l_ref[...] = jnp.zeros_like(l_ref)
        acc_ref[...] = jnp.zeros_like(acc_ref)

    def block_update(apply_mask):
        # q @ k^T without materializing a transpose (contract dim 1 of both).
        # q already carries the 1/sqrt(hd) scale (folded into the QKV weights).
        s = lax.dot_general(q_ref[...], k_ref[...], (((1,), (1,)), ((), ())),
                            preferred_element_type=jnp.float32)   # (tq, tk) f32
        if apply_mask:
            row = q_row0 + lax.broadcasted_iota(jnp.int32, (tq, tk), 0)
            col = k_col0 + lax.broadcasted_iota(jnp.int32, (tq, tk), 1)
            s = jnp.where(col <= row, s, jnp.float32(-1e30))
        m_prev = m_ref[...]
        m_new = jnp.maximum(m_prev, jnp.max(s, axis=-1, keepdims=True))
        alpha = jnp.exp(m_prev - m_new)
        pmat = jnp.exp(s - m_new)                                  # f32 softmax math
        l_ref[...] = alpha * l_ref[...] + jnp.sum(pmat, axis=-1, keepdims=True)
        acc_ref[...] = alpha * acc_ref[...] + jnp.dot(
            pmat.astype(v_ref.dtype), v_ref[...],
            preferred_element_type=jnp.float32)
        m_ref[...] = m_new

    # Every scheduled pair is causally relevant; only branch on mask/no-mask.
    @pl.when(full)
    def _no_mask():
        block_update(False)

    @pl.when(jnp.logical_not(full))
    def _with_mask():
        block_update(True)

    @pl.when(is_last)
    def _finalize():
        # deferred softmax normalization on the (tq, hd) accumulator only
        inv_l = pl.reciprocal(l_ref[...], approx=use_approx_recip)
        o_ref[...] = (acc_ref[...] * inv_l).astype(o_ref.dtype)


def flash_attention(qkv, *, use_approx_recip=True):
    """qkv: [3, B, H, T, hd] (stacked q/k/v). Returns [B, H, T, hd]."""
    three, B, H, T, hd = qkv.shape
    assert three == 3
    tq = _pick_tile(T, (512, 256, 128))
    tk = _pick_tile(T, (512, 256, 128))
    nq, nk = T // tq, T // tk

    # Lower-triangular (q_block, kv_block) schedule: upper-triangle blocks never
    # exist, so they cost neither K/V DMA nor grid-step overhead. Each q row's
    # first kv block is 0, so the running max is finite before any masked exp.
    q_ids, k_ids = [], []
    for i in range(nq):
        last_j = min((i * tq + tq - 1) // tk, nk - 1)
        q_ids.extend([i] * (last_j + 1))
        k_ids.extend(range(last_j + 1))
    n_pairs = len(q_ids)
    q_ids = jnp.asarray(q_ids, dtype=jnp.int32)
    k_ids = jnp.asarray(k_ids, dtype=jnp.int32)

    kernel = functools.partial(_flash_kernel, tq=tq, tk=tk,
                               use_approx_recip=use_approx_recip)
    return pl.pallas_call(
        kernel,
        out_shape=jax.ShapeDtypeStruct((B, H, T, hd), qkv.dtype),
        grid_spec=pltpu.PrefetchScalarGridSpec(
            num_scalar_prefetch=2,
            grid=(B, H, n_pairs),
            in_specs=[
                # q / k / v all read from the same stacked qkv array.
                pl.BlockSpec((None, None, None, tq, hd),
                             lambda b, h, p, qb, kb: (0, b, h, qb[p], 0)),
                pl.BlockSpec((None, None, None, tk, hd),
                             lambda b, h, p, qb, kb: (1, b, h, kb[p], 0)),
                pl.BlockSpec((None, None, None, tk, hd),
                             lambda b, h, p, qb, kb: (2, b, h, kb[p], 0)),
            ],
            out_specs=pl.BlockSpec((None, None, tq, hd),
                                   lambda b, h, p, qb, kb: (b, h, qb[p], 0)),
            scratch_shapes=[
                pltpu.VMEM((tq, 1), jnp.float32),    # running max
                pltpu.VMEM((tq, 1), jnp.float32),    # running sum
                pltpu.VMEM((tq, hd), jnp.float32),   # output accumulator
            ],
        ),
        compiler_params=pltpu.CompilerParams(
            dimension_semantics=("parallel", "parallel", "arbitrary"),
            vmem_limit_bytes=_VMEM_LIMIT),
    )(q_ids, k_ids, qkv, qkv, qkv)


# --------------------------------------------------------------------------
# Full module forward.
# --------------------------------------------------------------------------
def causal_self_attention(x, w_qkv, b_qkv, w_proj, b_proj, n_head,
                          compute_dtype=jnp.bfloat16):
    """x: [B, T, C]; w_qkv: [C, 3C]; b_qkv: [3C]; w_proj: [C, C]; b_proj: [C]."""
    B, T, C = x.shape
    assert C % n_head == 0
    hd = C // n_head
    out_dtype = x.dtype
    use_approx_recip = (compute_dtype == jnp.bfloat16)

    # Fold 1/sqrt(hd) into the q slice of the QKV weights/bias (done once in
    # f32 on the weights -> removes the per-kv-step q rescale from the kernel).
    scale = 1.0 / math.sqrt(hd)
    w_qkv = w_qkv.at[:, :C].multiply(scale)
    b_qkv = b_qkv.at[:C].multiply(scale)

    # bf16 MXU operands (f32 accumulation inside the kernels; bias stays f32)
    xc = x.reshape(B * T, C).astype(compute_dtype)
    wq = w_qkv.astype(compute_dtype)
    wp = w_proj.astype(compute_dtype)

    # QKV projection (tiled matmul + bias)
    qkv = linear_pallas(xc, wq, b_qkv, out_dtype=compute_dtype)       # (B*T, 3C)

    # Single layout pass: (B*T, 3C) -> (3, B, H, T, hd). The attention kernel
    # indexes q/k/v straight out of this one array (no per-tensor slices).
    qkv = qkv.reshape(B, T, 3, n_head, hd).transpose(2, 0, 3, 1, 4)

    y = flash_attention(qkv, use_approx_recip=use_approx_recip)       # (B, H, T, hd)
    # TODO(synk): a head-packed, lane-dense (B*T, C) attention output would
    # remove this transpose pass and the masked hd-wide stores (v6e/v7x win).
    y = y.transpose(0, 2, 1, 3).reshape(B * T, C)

    # Output projection; attn_dropout / resid_dropout are identity (dropout=0).
    # TODO(synk): dropout > 0 (training mode) would need pltpu.prng_* in-kernel.
    out = linear_pallas(y, wp, b_proj, out_dtype=out_dtype)           # (B*T, C)
    return out.reshape(B, T, C)


# --------------------------------------------------------------------------
# Pure-JAX reference (matches the PyTorch forward with dropout=0).
# --------------------------------------------------------------------------
def _reference(x, w_qkv, b_qkv, w_proj, b_proj, n_head):
    B, T, C = x.shape
    hd = C // n_head
    qkv = jnp.einsum('btc,cd->btd', x, w_qkv) + b_qkv
    q, k, v = jnp.split(qkv, 3, axis=-1)
    q = q.reshape(B, T, n_head, hd).transpose(0, 2, 1, 3)
    k = k.reshape(B, T, n_head, hd).transpose(0, 2, 1, 3)
    v = v.reshape(B, T, n_head, hd).transpose(0, 2, 1, 3)
    s = jnp.einsum('bhqd,bhkd->bhqk', q, k) / math.sqrt(hd)
    mask = jnp.tril(jnp.ones((T, T), dtype=bool))
    s = jnp.where(mask, s, -jnp.inf)
    p = jax.nn.softmax(s, axis=-1)
    y = jnp.einsum('bhqk,bhkd->bhqd', p, v)
    y = y.transpose(0, 2, 1, 3).reshape(B, T, C)
    return jnp.einsum('btc,cd->btd', y, w_proj) + b_proj


if __name__ == "__main__":
    def _make_inputs(B, T, C, seed):
        key = jax.random.PRNGKey(seed)
        k1, k2, k3, k4, k5 = jax.random.split(key, 5)
        x = jax.random.normal(k1, (B, T, C), dtype=jnp.float32)
        # weights stored as [in, out] (i.e. PyTorch weight.T)
        w_qkv = jax.random.normal(k2, (C, 3 * C), dtype=jnp.float32) / math.sqrt(C)
        b_qkv = jax.random.normal(k3, (3 * C,), dtype=jnp.float32) * 0.02
        w_proj = jax.random.normal(k4, (C, C), dtype=jnp.float32) / math.sqrt(C)
        b_proj = jax.random.normal(k5, (C,), dtype=jnp.float32) * 0.02
        return x, w_qkv, b_qkv, w_proj, b_proj

    # small GPT config: n_embd=32, n_head=4, seq=8, batch=2, bias=True, dropout=0
    B, T, C, n_head = 2, 8, 32, 4
    x, w_qkv, b_qkv, w_proj, b_proj = _make_inputs(B, T, C, 0)
    ref = _reference(x, w_qkv, b_qkv, w_proj, b_proj, n_head)

    # exact (f32-compute) path: tight numerical check
    out_f32 = jax.block_until_ready(
        causal_self_attention(x, w_qkv, b_qkv, w_proj, b_proj, n_head,
                              compute_dtype=jnp.float32))
    assert out_f32.shape == (B, T, C)
    assert jnp.allclose(out_f32, ref, atol=3e-4, rtol=3e-4), "f32 path mismatch"

    # default bf16-MXU path (f32 accumulation): loose check
    out_bf16 = jax.block_until_ready(
        causal_self_attention(x, w_qkv, b_qkv, w_proj, b_proj, n_head))
    assert out_bf16.shape == (B, T, C)
    max_err = float(jnp.max(jnp.abs(out_bf16 - ref)))
    assert max_err < 0.2, f"bf16 path mismatch (max err {max_err})"

    # medium config exercising the multi-block lower-triangular pair schedule
    B2, T2, C2, H2 = 1, 1024, 128, 2
    x2, wq2, bq2, wp2, bp2 = _make_inputs(B2, T2, C2, 1)
    ref2 = _reference(x2, wq2, bq2, wp2, bp2, H2)
    out2 = jax.block_until_ready(
        causal_self_attention(x2, wq2, bq2, wp2, bp2, H2,
                              compute_dtype=jnp.float32))
    err2 = float(jnp.max(jnp.abs(out2 - ref2)))
    assert err2 < 2e-3, f"multi-block f32 path mismatch (max err {err2})"

    print("KERNEL_OK")
</pallas_src>

<mosaic_0001>
module attributes {stable_mosaic.version = 11 : i64} {
  func.func @_linear_bias_kernel(%arg0: i32, %arg1: i32, %arg2: i32, %arg3: memref<16x32xf32, #tpu.memory_space<vmem>>, %arg4: memref<32x96xf32, #tpu.memory_space<vmem>>, %arg5: memref<1x96xf32, #tpu.memory_space<vmem>>, %arg6: memref<16x96xf32, #tpu.memory_space<vmem>>, %arg7: memref<16x96xf32, #tpu.memory_space<vmem>>) attributes {dimension_semantics = [#tpu.dimension_semantics<parallel>, #tpu.dimension_semantics<parallel>, #tpu.dimension_semantics<arbitrary>], iteration_bounds = array<i64: 1, 1, 1>, scalar_prefetch = 0 : i64, scratch_operands = 1 : i64, tpu.core_type = #tpu.core_type<tc>, window_params = [{transform_indices = @transform_0, window_bounds = array<i64: 16, 32>}, {transform_indices = @transform_1, window_bounds = array<i64: 32, 96>}, {transform_indices = @transform_2, window_bounds = array<i64: 1, 96>}, {transform_indices = @transform_3, window_bounds = array<i64: 16, 96>}]} {
    %c0_i32 = arith.constant 0 : i32
    %0 = arith.cmpi eq, %arg2, %c0_i32 : i32
    %1 = arith.extui %0 : i1 to i32
    %c0_i32_0 = arith.constant 0 : i32
    %2 = arith.cmpi ne, %1, %c0_i32_0 : i32
    scf.if %2 {
      %cst_10 = arith.constant 0.000000e+00 : f32
      %12 = vector.broadcast %cst_10 : f32 to vector<16x96xf32>
      %c0_11 = arith.constant 0 : index
      %c0_12 = arith.constant 0 : index
      %13 = vector.load %arg7[%c0_11, %c0_12] : memref<16x96xf32, #tpu.memory_space<vmem>>, vector<16x96xf32>
      tpu.vector_store %arg7[%c0_11, %c0_12], %12 {strides = array<i32>} : memref<16x96xf32, #tpu.memory_space<vmem>>, vector<16x96xf32>,
    } else {
    }
    %c0 = arith.constant 0 : index
    %c0_1 = arith.constant 0 : index
    %3 = vector.load %arg7[%c0, %c0_1] : memref<16x96xf32, #tpu.memory_space<vmem>>, vector<16x96xf32>
    %c0_2 = arith.constant 0 : index
    %c0_3 = arith.constant 0 : index
    %4 = vector.load %arg3[%c0_2, %c0_3] : memref<16x32xf32, #tpu.memory_space<vmem>>, vector<16x32xf32>
    %c0_4 = arith.constant 0 : index
    %c0_5 = arith.constant 0 : index
    %5 = vector.load %arg4[%c0_4, %c0_5] : memref<32x96xf32, #tpu.memory_space<vmem>>, vector<32x96xf32>
    %cst = arith.constant dense<0.000000e+00> : vector<16x96xf32>
    %6 = tpu.matmul %4, %5, %cst {dimension_numbers = #tpu.dot_dimension_numbers<[1], [0], [0], [1], [0, 0, 1, 1], [], []>} : vector<16x32xf32>, vector<32x96xf32>, vector<16x96xf32> -> vector<16x96xf32>
    %7 = arith.addf %3, %6 : vector<16x96xf32>
    %c0_6 = arith.constant 0 : index
    %c0_7 = arith.constant 0 : index
    %8 = vector.load %arg7[%c0_6, %c0_7] : memref<16x96xf32, #tpu.memory_space<vmem>>, vector<16x96xf32>
    tpu.vector_store %arg7[%c0_6, %c0_7], %7 {strides = array<i32>} : memref<16x96xf32, #tpu.memory_space<vmem>>, vector<16x96xf32>,
    %c0_i32_8 = arith.constant 0 : i32
    %9 = arith.cmpi eq, %arg2, %c0_i32_8 : i32
    %10 = arith.extui %9 : i1 to i32
    %c0_i32_9 = arith.constant 0 : i32
    %11 = arith.cmpi ne, %10, %c0_i32_9 : i32
    scf.if %11 {
      %c0_10 = arith.constant 0 : index
      %c0_11 = arith.constant 0 : index
      %12 = vector.load %arg7[%c0_10, %c0_11] : memref<16x96xf32, #tpu.memory_space<vmem>>, vector<16x96xf32>
      %c0_12 = arith.constant 0 : index
      %c0_13 = arith.constant 0 : index
      %13 = vector.load %arg5[%c0_12, %c0_13] : memref<1x96xf32, #tpu.memory_space<vmem>>, vector<1x96xf32>
      %14 = vector.broadcast %13 : vector<1x96xf32> to vector<16x96xf32>
      %15 = arith.addf %12, %14 : vector<16x96xf32>
      %c0_14 = arith.constant 0 : index
      %c0_15 = arith.constant 0 : index
      %16 = vector.load %arg6[%c0_14, %c0_15] : memref<16x96xf32, #tpu.memory_space<vmem>>, vector<16x96xf32>
      tpu.vector_store %arg6[%c0_14, %c0_15], %15 {strides = array<i32>} : memref<16x96xf32, #tpu.memory_space<vmem>>, vector<16x96xf32>,
    } else {
    }
    return
  }
  func.func @transform_0(%arg0: i32, %arg1: i32, %arg2: i32) -> (i32, i32) {
    %c0_i32 = arith.constant 0 : i32
    return %arg0, %arg2 : i32, i32
  }
  func.func @transform_1(%arg0: i32, %arg1: i32, %arg2: i32) -> (i32, i32) {
    %c0_i32 = arith.constant 0 : i32
    return %arg2, %arg1 : i32, i32
  }
  func.func @transform_2(%arg0: i32, %arg1: i32, %arg2: i32) -> (i32, i32) {
    %c0_i32 = arith.constant 0 : i32
    %c0_i32_0 = arith.constant 0 : i32
    return %c0_i32, %arg1 : i32, i32
  }
  func.func @transform_3(%arg0: i32, %arg1: i32, %arg2: i32) -> (i32, i32) {
    %c0_i32 = arith.constant 0 : i32
    return %arg0, %arg1 : i32, i32
  }
}

</mosaic_0001>

<llo_original>
// kernel: tpu_custom_call.1
$region0: #{tpu_custom_call.1}
  #allocation0 [shape = 'u32[]', space=smem, size = 0x4, offset = 0x4, fixed_abs, tag = 'smem constant byte address 0x4 - core index']
  #allocation1 [shape = 'u32[144,128]{1,0:T(1,128)}', space=vmem, size = 0x12000, scoped, tag = 'internal scratch']
  #allocation2 [shape = 'f32[16,96]{1,0:T(8,128)}', space=vmem, size = 0x2000, scoped, tag = 'scratch operand']
  %s0 = inlined_call_operand.hbm [shape: f32[16,32], index: 0, kind: input, shape index: {}]
  %s1 = inlined_call_operand.hbm [shape: f32[32,96], index: 1, kind: input, shape index: {}]
  %s2 = inlined_call_operand.vmem [shape: f32[1,96], index: 2, kind: input, shape index: {}]
  %s3 = inlined_call_operand.hbm [shape: f32[16,96], index: 3, kind: output, shape index: {}]
  %s4 = sld [smem:[#allocation0]]
  $region38: #{tpu_custom_call.1} parent=0
    _
  %s6 = ssub.s32 1, %s4
  %s7 = scalar_select 0, %s6, %s4
  $region1: #{tpu_custom_call.1} parent=0
    #allocation3 [shape = 'u8[8192]{0}', space=vmem, size = 0x2000, scoped, tag = 'input window, operand 0, single buffered']
    #allocation4 [shape = 's32[1]{0}', space=sflag, size = 0x4, scoped, tag = 'scoped memory for tpu_custom_call.1']
    #allocation5 [shape = 's32[1]{0}', space=sflag, size = 0x4, scoped, tag = 'scoped memory for tpu_custom_call.1']
    #allocation6 [shape = 'u8[16384]{0}', space=vmem, size = 0x4000, scoped, tag = 'input window, operand 1, single buffered']
    #allocation7 [shape = 's32[1]{0}', space=sflag, size = 0x4, scoped, tag = 'scoped memory for tpu_custom_call.1']
    #allocation8 [shape = 'u8[8192]{0}', space=vmem, size = 0x2000, scoped, tag = 'output window, operand 0, single buffered']
    %8 = vsyncpa [#allocation4], 0
    %9 = vsyncpa [#allocation7], 0
    %10 = vsyncpa [#allocation5], 0
    // Predicated region
    $region2: #{tpu_custom_call.1} parent=1 // pred_check
      _
    $region3: #{tpu_custom_call.1} parent=1 // pred_check_branch
      %12 = sbr.rel (0) target = $region5
    $region4: #{tpu_custom_call.1} parent=1 // pred_region
      %s14 = ssub.s32 256, 256
      %15 = vsyncadd [#allocation4], %s14
      %s16 = sshll.u32 [#allocation3], 4
      %s17 = int_to_ptr.vmem [resolvable:$true] %s16
      %22 = dma.hbm_to_vmem [thread:$0]  %s0, 256, %s17, [#allocation4], 128, 128, 8
    $region5: #{tpu_custom_call.1} parent=1 // pred_fallthru
      _
    // Predicated region
    $region6: #{tpu_custom_call.1} parent=1 // pred_check
      _
    $region7: #{tpu_custom_call.1} parent=1 // pred_check_branch
      %24 = sbr.rel (0) target = $region9
    $region8: #{tpu_custom_call.1} parent=1 // pred_region
      %s26 = ssub.s32 512, 512
      %27 = vsyncadd [#allocation7], %s26
      %s28 = sshll.u32 [#allocation6], 4
      %s29 = int_to_ptr.vmem [resolvable:$true] %s28
      %34 = dma.hbm_to_vmem [thread:$0]  %s1, 512, %s29, [#allocation7], 128, 128, 8
    $region9: #{tpu_custom_call.1} parent=1 // pred_fallthru
      _
    // Predicated region
    $region10: #{tpu_custom_call.1} parent=1 // pred_check
      _
    $region11: #{tpu_custom_call.1} parent=1 // pred_check_branch
      %36 = sbr.rel (0) target = $region13
    $region12: #{tpu_custom_call.1} parent=1 // pred_region
      _
    $region13: #{tpu_custom_call.1} parent=1 // pred_fallthru
      _
    // Predicated region
    $region14: #{tpu_custom_call.1} parent=1 // pred_check
      _
    $region15: #{tpu_custom_call.1} parent=1 // pred_check_branch
      %38 = sbr.rel (0) target = $region17
    $region16: #{tpu_custom_call.1} parent=1 // pred_region
      %39 = dma.done [#allocation4], 256
    $region17: #{tpu_custom_call.1} parent=1 // pred_fallthru
      _
    // Predicated region
    $region18: #{tpu_custom_call.1} parent=1 // pred_check
      _
    $region19: #{tpu_custom_call.1} parent=1 // pred_check_branch
      %41 = sbr.rel (0) target = $region21
    $region20: #{tpu_custom_call.1} parent=1 // pred_region
      %42 = dma.done [#allocation7], 512
    $region21: #{tpu_custom_call.1} parent=1 // pred_fallthru
      _
    %p43 = scmp.eq.s32.totalorder 0, 0
    // Predicated region
    $region22: #{tpu_custom_call.1} parent=1 // pred_check
      %p44 = pneg %p43
    $region23: #{tpu_custom_call.1} parent=1 // pred_check_branch
      %46 = sbr.rel (%p44) target = $region25
    $region24: #{tpu_custom_call.1} parent=1 // pred_region
      %vm47 = vcmask 785408
      %48 = vst.msk [vmem:[#allocation2] sm:$0xff] %vm47, 0.0
      %49 = vst.msk [vmem:[#allocation2 + $0x8] sm:$0xff] %vm47, 0.0
    $region25: #{tpu_custom_call.1} parent=1 // pred_fallthru
      _
    %v50 = vld [vmem:[#allocation2] sm:$0xff]
    %v51 = vld [vmem:[#allocation2 + $0x8] sm:$0xff]
    %v52 = vld [vmem:[#allocation3] sm:$0xff]
    %v53 = vld [vmem:[#allocation3 + $0x8] sm:$0xff]
    %v54 = vld [vmem:[#allocation6] sm:$0xff]
    %v55 = vld [vmem:[#allocation6 + $0x8] sm:$0xff]
    %v56 = vld [vmem:[#allocation6 + $0x10] sm:$0xff]
    %v57 = vld [vmem:[#allocation6 + $0x18] sm:$0xff]
    %vm58 = vcmask 261120
    %v60 = vsel %vm58, %v52, 0
    %v63 = vsel %vm58, %v53, 0
    %65 = vmatprep.subr.mxu0 0.0
    %66 = vmatpush1.msra.mxu0 %v54
    %67 = vmatprep.subr.mxu0 0.0
    %68 = vmatpush1.msra.mxu0 %v55
    %69 = vmatprep.subr.mxu0 0.0
    %70 = vmatpush1.msra.mxu0 %v56
    %71 = vmatprep.subr.mxu0 0.0
    %72 = vmatpush1.msra.mxu0 %v57
    %73 = vmatprep.subr.mxu0 0.0
    %74 = vmatpush1.msra.mxu0 0.0
    %75 = vmatprep.subr.mxu0 0.0
    %76 = vmatpush1.msra.mxu0 0.0
    %77 = vmatprep.subr.mxu0 0.0
    %78 = vmatpush1.msra.mxu0 0.0
    %79 = vmatprep.subr.mxu0 0.0
    %80 = vmatpush1.msra.mxu0 0.0
    %81 = vmatprep.subr.mxu0 0.0
    %82 = vmatpush1.msra.mxu0 0.0
    %83 = vmatprep.subr.mxu0 0.0
    %84 = vmatpush1.msra.mxu0 0.0
    %85 = vmatprep.subr.mxu0 0.0
    %86 = vmatpush1.msra.mxu0 0.0
    %87 = vmatprep.subr.mxu0 0.0
    %88 = vmatpush1.msra.mxu0 0.0
    %89 = vmatprep.subr.mxu0 0.0
    %90 = vmatpush1.msra.mxu0 0.0
    %91 = vmatprep.subr.mxu0 0.0
    %92 = vmatpush1.msra.mxu0 0.0
    %93 = vmatprep.subr.mxu0 0.0
    %94 = vmatpush1.msra.mxu0 0.0
    %95 = vmatprep.subr.mxu0 0.0
    %96 = vmatpush1.msra.mxu0 0.0
    %97 = vmatprep.subr.mxu0 0.0
    %98 = vmatpush1.msra.mxu0 0.0
    %99 = vmatprep.subr.mxu0 0.0
    %100 = vmatpush1.msra.mxu0 0.0
    %101 = vmatprep.subr.mxu0 0.0
    %102 = vmatpush1.msra.mxu0 0.0
    %103 = vmatprep.subr.mxu0 0.0
    %104 = vmatpush1.msra.mxu0 0.0
    %105 = vmatprep.subr.mxu0 0.0
    %106 = vmatpush1.msra.mxu0 0.0
    %107 = vmatprep.subr.mxu0 0.0
    %108 = vmatpush1.msra.mxu0 0.0
    %109 = vmatprep.subr.mxu0 0.0
    %110 = vmatpush1.msra.mxu0 0.0
    %111 = vmatprep.subr.mxu0 0.0
    %112 = vmatpush1.msra.mxu0 0.0
    %113 = vmatprep.subr.mxu0 0.0
    %114 = vmatpush1.msra.mxu0 0.0
    %115 = vmatprep.subr.mxu0 0.0
    %116 = vmatpush1.msra.mxu0 0.0
    %117 = vmatprep.subr.mxu0 0.0
    %118 = vmatpush1.msra.mxu0 0.0
    %119 = vmatprep.subr.mxu0 0.0
    %120 = vmatpush1.msra.mxu0 0.0
    %121 = vmatprep.subr.mxu0 0.0
    %122 = vmatpush1.msra.mxu0 0.0
    %123 = vmatprep.subr.mxu0 0.0
    %124 = vmatpush1.msra.mxu0 0.0
    %125 = vmatprep.subr.mxu0 0.0
    %126 = vmatpush1.msra.mxu0 0.0
    %127 = vmatprep.subr.mxu0 0.0
    %128 = vmatpush1.msra.mxu0 0.0
    %129 = vmatprep.mubr.f32.mxu0 0.0
    %130 = vmatmul.mubr.f32.gmra.mrb[0].mxu0 %v60
    %v131 = vpop.f32.mrb[0].mxu0
    %v132 = vadd.f32 0.0, %v131
    %v133 = vpop.f32.mrb[0].mxu0
    %134 = vmatprep.mubr.f32.mxu0 0.0
    %135 = vmatmul.mubr.f32.gmra.mrb[0].mxu0 %v63
    %v136 = vpop.f32.mrb[0].mxu0
    %v137 = vadd.f32 0.0, %v136
    %v138 = vpop.f32.mrb[0].mxu0
    %139 = vdwg.mxu0
    %v140 = vadd.f32 %v50, %v132
    %v141 = vadd.f32 %v51, %v137
    %vm142 = vcmask 785408
    %143 = vst.msk [vmem:[#allocation2] sm:$0xff] %vm142, %v140
    %144 = vst.msk [vmem:[#allocation2 + $0x8] sm:$0xff] %vm142, %v141
    // Predicated region
    $region26: #{tpu_custom_call.1} parent=1 // pred_check
      %p145 = pneg %p43
    $region27: #{tpu_custom_call.1} parent=1 // pred_check_branch
      %147 = sbr.rel (%p145) target = $region29
    $region28: #{tpu_custom_call.1} parent=1 // pred_region
      %v148 = vld [vmem:[#allocation2] sm:$0xff]
      %v149 = vld [vmem:[#allocation2 + $0x8] sm:$0xff]
      %v150 = vld [vmem:[%s2] sm:$0x1]
      %v152 = vlaneseq
      %v153 = vshrl.u32 %v152, 7
      %v154 = vsub.s32 0, %v153
      %v155 = vrot.slane %v150, %v154
      %v157 = vadd.f32 %v148, %v155
      %v158 = vadd.f32 %v149, %v155
      %159 = vst.msk [vmem:[#allocation8] sm:$0xff] %vm142, %v157
      %160 = vst.msk [vmem:[#allocation8 + $0x8] sm:$0xff] %vm142, %v158
    $region29: #{tpu_custom_call.1} parent=1 // pred_fallthru
      _
    // Predicated region
    $region30: #{tpu_custom_call.1} parent=1 // pred_check
      _
    $region31: #{tpu_custom_call.1} parent=1 // pred_check_branch
      %162 = sbr.rel (0) target = $region33
    $region32: #{tpu_custom_call.1} parent=1 // pred_region
      %s164 = ssub.s32 256, 256
      %165 = vsyncadd [#allocation5], %s164
      %s166 = sshll.u32 [#allocation8], 4
      %s167 = int_to_ptr.vmem [resolvable:$true] %s166
      %172 = dma.vmem_to_hbm [thread:$0]  %s167, 256, %s3, [#allocation5], 128, 128, 8
    $region33: #{tpu_custom_call.1} parent=1 // pred_fallthru
      _
    // Predicated region
    $region34: #{tpu_custom_call.1} parent=1 // pred_check
      _
    $region35: #{tpu_custom_call.1} parent=1 // pred_check_branch
      %174 = sbr.rel (0) target = $region37
    $region36: #{tpu_custom_call.1} parent=1 // pred_region
      %175 = dma.done [#allocation5], 256
    $region37: #{tpu_custom_call.1} parent=1 // pred_fallthru
      _
    %176 = vsyncpa [#allocation4], 1
    %177 = vsyncpa [#allocation7], 1
    %178 = vsyncpa [#allocation5], 1

</llo_original>
